<compile_context>
chip_gen: v5e
topology: v5e:2x2
jax: 0.10.0
libtpu: 0.0.40
codegen_flags: <defaults>
</compile_context>

<pallas_src>
import functools

import jax
import jax.numpy as jnp
from jax.experimental import pallas as pl
from jax.experimental.pallas import tpu as pltpu

_MIB = 1024 * 1024


def _mape_kernel(f_ref, t_ref, m_ref, o_ref, *, b, t_len, tb, tt):
    i = pl.program_id(0)  # batch-tile index (parallel)
    j = pl.program_id(1)  # time-tile index  (parallel)

    f = f_ref[...].astype(jnp.float32)
    tgt = t_ref[...].astype(jnp.float32)
    m = m_ref[...].astype(jnp.float32)

    w = m / tgt
    # divide_no_nan: replace NaN and +inf with 0 (note: -inf is intentionally kept,
    # matching the PyTorch reference which only checks `result == np.inf`).
    w = jnp.where(jnp.isnan(w), jnp.float32(0.0), w)
    w = jnp.where(w == jnp.inf, jnp.float32(0.0), w)

    vals = jnp.abs((f - tgt) * w)

    ragged_b = (b % tb) != 0
    ragged_t = (t_len % tt) != 0

    if not (ragged_b or ragged_t):
        # Clean tiling: no masking needed anywhere (compile-time branch).
        o_ref[0, 0] = jnp.sum(vals)
    else:
        # Only the last row/col tiles need masking; gate the extra VALU work so
        # interior tiles stay on the cheap path (matters most on v7x's HBM budget).
        is_edge = False
        if ragged_b:
            is_edge = jnp.logical_or(is_edge, i == pl.num_programs(0) - 1)
        if ragged_t:
            is_edge = jnp.logical_or(is_edge, j == pl.num_programs(1) - 1)

        @pl.when(is_edge)
        def _():
            valid = None
            if ragged_b:
                row = jax.lax.broadcasted_iota(jnp.int32, (tb, tt), 0)
                valid = row < (b - i * tb)            # scalar bound, no vector add
            if ragged_t:
                col = jax.lax.broadcasted_iota(jnp.int32, (tb, tt), 1)
                cm = col < (t_len - j * tt)
                valid = cm if valid is None else jnp.logical_and(valid, cm)
            o_ref[0, 0] = jnp.sum(jnp.where(valid, vals, jnp.float32(0.0)))

        @pl.when(jnp.logical_not(is_edge))
        def _():
            o_ref[0, 0] = jnp.sum(vals)


def _vmem_capacity_bytes():
    try:
        return int(pltpu.get_tpu_info().vmem_capacity_bytes)
    except Exception:
        return 64 * _MIB  # conservative fallback (v7x-sized)


def mape_loss(insample, freq, forecast, target, mask, *, tb_pref=None, tt_pref=None):
    """Pallas TPU MAPE loss. forecast/target/mask: (batch, time). Returns scalar f32."""
    del insample, freq  # unused in the reference forward
    assert forecast.shape == target.shape == mask.shape
    assert forecast.ndim == 2
    b, t_len = forecast.shape

    vmem_cap = _vmem_capacity_bytes()
    if tb_pref is None or tt_pref is None:
        # Generation-aware defaults (sized for 3 x f32 inputs, double-buffered).
        if vmem_cap >= 96 * _MIB:          # v5e / v6e: 128 MiB physical VMEM
            auto_tb, auto_tt = 1024, 2048  # 48 MiB of input buffers
        else:                              # v7x: 64 MiB physical VMEM
            auto_tb, auto_tt = 512, 2048   # 24 MiB of input buffers
        tb_pref = auto_tb if tb_pref is None else tb_pref
        tt_pref = auto_tt if tt_pref is None else tt_pref

    # Block dims: either the full dim (always legal) or an aligned tile
    # (tb multiple of 8, tt multiple of 128).
    tb = b if b <= tb_pref else tb_pref
    tt = t_len if t_len <= tt_pref else tt_pref
    nb = pl.cdiv(b, tb)
    nt = pl.cdiv(t_len, tt)

    # Explicit scoped-VMEM budget: 2 pipeline buffers per input block + headroom.
    in_itembytes = sum(jnp.dtype(x.dtype).itemsize for x in (forecast, target, mask))
    buf_bytes = 2 * tb * tt * in_itembytes
    vmem_limit = int(min(buf_bytes + 16 * _MIB, max(vmem_cap - 4 * _MIB, 32 * _MIB)))

    total_in_bytes = sum(int(x.size) * jnp.dtype(x.dtype).itemsize
                         for x in (forecast, target, mask))
    cost = pl.CostEstimate(
        flops=9 * b * t_len,
        transcendentals=0,
        bytes_accessed=total_in_bytes + nb * nt * 4,
    )

    kernel = functools.partial(_mape_kernel, b=b, t_len=t_len, tb=tb, tt=tt)

    partial_sums = pl.pallas_call(
        kernel,
        out_shape=jax.ShapeDtypeStruct((nb, nt), jnp.float32),
        grid=(nb, nt),
        in_specs=[
            pl.BlockSpec((tb, tt), lambda i, j: (i, j)),
            pl.BlockSpec((tb, tt), lambda i, j: (i, j)),
            pl.BlockSpec((tb, tt), lambda i, j: (i, j)),
        ],
        out_specs=pl.BlockSpec(
            (1, 1), lambda i, j: (i, j), memory_space=pltpu.MemorySpace.SMEM
        ),
        compiler_params=pltpu.CompilerParams(
            dimension_semantics=("parallel", "parallel"),
            vmem_limit_bytes=vmem_limit,
        ),
        cost_estimate=cost,
    )(forecast, target, mask)

    # Cross-tile sum + single divide-by-N in the wrapper (preserves mean semantics).
    return jnp.sum(partial_sums) / (b * t_len)


def _reference(forecast, target, mask):
    f = forecast.astype(jnp.float32)
    t = target.astype(jnp.float32)
    m = mask.astype(jnp.float32)
    w = m / t
    w = jnp.where(jnp.isnan(w), 0.0, w)
    w = jnp.where(w == jnp.inf, 0.0, w)
    return jnp.mean(jnp.abs((f - t) * w))


if __name__ == "__main__":
    key = jax.random.PRNGKey(0)
    keys = jax.random.split(key, 12)

    # --- Test 1: small shape, single block (block == full array dims) ---
    batch, time = 2, 16
    forecast = jax.random.normal(keys[0], (batch, time), dtype=jnp.float32)
    target = jax.random.normal(keys[1], (batch, time), dtype=jnp.float32)
    zero_pos = jax.random.bernoulli(keys[2], p=0.2, shape=(batch, time))
    target = jnp.where(zero_pos, 0.0, target)  # exercise divide_no_nan
    mask = jax.random.bernoulli(keys[3], p=0.8, shape=(batch, time)).astype(jnp.float32)

    insample = jnp.zeros((batch, 32), dtype=jnp.float32)  # unused, mirrors signature
    freq = 1

    loss = mape_loss(insample, freq, forecast, target, mask)
    loss = jax.block_until_ready(loss)
    ref = _reference(forecast, target, mask)
    assert jnp.allclose(loss, ref, rtol=1e-6, atol=1e-6), (loss, ref)

    # --- Test 2: ragged multi-tile path (3x3 grid, edge-block masking) ---
    b2, t2len = 20, 300
    f2 = jax.random.normal(keys[4], (b2, t2len), dtype=jnp.float32)
    t2 = jax.random.normal(keys[5], (b2, t2len), dtype=jnp.float32)
    t2 = jnp.where(t2 >= 0, t2 + 0.5, t2 - 0.5)  # keep |target| >= 0.5
    zp2 = jax.random.bernoulli(keys[6], p=0.1, shape=(b2, t2len))
    t2 = jnp.where(zp2, 0.0, t2)                 # plus exact zeros for divide_no_nan
    m2 = jax.random.bernoulli(keys[7], p=0.8, shape=(b2, t2len)).astype(jnp.float32)
    ins2 = jnp.zeros((b2, 32), dtype=jnp.float32)

    loss2 = mape_loss(ins2, 1, f2, t2, m2, tb_pref=8, tt_pref=128)
    loss2 = jax.block_until_ready(loss2)
    ref2 = _reference(f2, t2, m2)
    assert jnp.allclose(loss2, ref2, rtol=1e-5, atol=1e-6), (loss2, ref2)

    # --- Test 3: narrow HBM dtypes (bf16 forecast/target, bool mask) ---
    b3, t3len = 16, 256
    f3 = jax.random.normal(keys[8], (b3, t3len), dtype=jnp.float32).astype(jnp.bfloat16)
    t3 = jax.random.normal(keys[9], (b3, t3len), dtype=jnp.float32)
    t3 = jnp.where(t3 >= 0, t3 + 0.5, t3 - 0.5)
    zp3 = jax.random.bernoulli(keys[10], p=0.1, shape=(b3, t3len))
    t3 = jnp.where(zp3, 0.0, t3).astype(jnp.bfloat16)
    m3 = jax.random.bernoulli(keys[11], p=0.8, shape=(b3, t3len))  # bool mask in HBM
    ins3 = jnp.zeros((b3, 32), dtype=jnp.bfloat16)

    loss3 = mape_loss(ins3, 1, f3, t3, m3)
    loss3 = jax.block_until_ready(loss3)
    ref3 = _reference(f3, t3, m3)
    assert jnp.allclose(loss3, ref3, rtol=1e-5, atol=1e-6), (loss3, ref3)

    print("KERNEL_OK")
</pallas_src>

<mosaic_0001>
module attributes {stable_mosaic.version = 11 : i64} {
  func.func @_mape_kernel(%arg0: i32, %arg1: i32, %arg2: memref<2x16xf32, #tpu.memory_space<vmem>>, %arg3: memref<2x16xf32, #tpu.memory_space<vmem>>, %arg4: memref<2x16xf32, #tpu.memory_space<vmem>>, %arg5: memref<1x1xf32, #tpu.memory_space<smem>>) attributes {dimension_semantics = [#tpu.dimension_semantics<parallel>, #tpu.dimension_semantics<parallel>], iteration_bounds = array<i64: 1, 1>, scalar_prefetch = 0 : i64, scratch_operands = 0 : i64, tpu.core_type = #tpu.core_type<tc>, window_params = [{transform_indices = @transform_0, window_bounds = array<i64: 2, 16>}, {transform_indices = @transform_1, window_bounds = array<i64: 2, 16>}, {transform_indices = @transform_2, window_bounds = array<i64: 2, 16>}, {transform_indices = @transform_3, window_bounds = array<i64: 1, 1>}]} {
    %c0 = arith.constant 0 : index
    %c0_0 = arith.constant 0 : index
    %0 = vector.load %arg2[%c0, %c0_0] : memref<2x16xf32, #tpu.memory_space<vmem>>, vector<2x16xf32>
    %c0_1 = arith.constant 0 : index
    %c0_2 = arith.constant 0 : index
    %1 = vector.load %arg3[%c0_1, %c0_2] : memref<2x16xf32, #tpu.memory_space<vmem>>, vector<2x16xf32>
    %c0_3 = arith.constant 0 : index
    %c0_4 = arith.constant 0 : index
    %2 = vector.load %arg4[%c0_3, %c0_4] : memref<2x16xf32, #tpu.memory_space<vmem>>, vector<2x16xf32>
    %3 = arith.divf %2, %1 : vector<2x16xf32>
    %4 = arith.cmpf one, %3, %3 : vector<2x16xf32>
    %cst = arith.constant 0.000000e+00 : f32
    %5 = vector.broadcast %cst : f32 to vector<2x16xf32>
    %6 = arith.select %4, %5, %3 : vector<2x16xi1>, vector<2x16xf32>
    %cst_5 = arith.constant 0x7F800000 : f32
    %7 = vector.broadcast %cst_5 : f32 to vector<2x16xf32>
    %8 = arith.cmpf oeq, %6, %7 : vector<2x16xf32>
    %cst_6 = arith.constant 0.000000e+00 : f32
    %9 = vector.broadcast %cst_6 : f32 to vector<2x16xf32>
    %10 = arith.select %8, %9, %6 : vector<2x16xi1>, vector<2x16xf32>
    %11 = arith.subf %0, %1 : vector<2x16xf32>
    %12 = arith.mulf %11, %10 : vector<2x16xf32>
    %13 = math.absf %12 : vector<2x16xf32>
    %14 = vector.shape_cast %13 : vector<2x16xf32> to vector<1x2x16xf32>
    %cst_7 = arith.constant dense<0.000000e+00> : vector<1xf32>
    %15 = vector.multi_reduction <add>, %14, %cst_7 [1, 2] : vector<1x2x16xf32> to vector<1xf32>
    %16 = vector.shape_cast %15 : vector<1xf32> to vector<1x1x1xf32>
    %17 = vector.extract %16[0, 0, 0] : f32 from vector<1x1x1xf32>
    %c0_8 = arith.constant 0 : index
    %c0_9 = arith.constant 0 : index
    %18 = memref.load %arg5[%c0_8, %c0_9] : memref<1x1xf32, #tpu.memory_space<smem>>
    memref.store %17, %arg5[%c0_8, %c0_9] : memref<1x1xf32, #tpu.memory_space<smem>>
    return
  }
  func.func @transform_0(%arg0: i32, %arg1: i32) -> (i32, i32) {
    %c0_i32 = arith.constant 0 : i32
    return %arg0, %arg1 : i32, i32
  }
  func.func @transform_1(%arg0: i32, %arg1: i32) -> (i32, i32) {
    %c0_i32 = arith.constant 0 : i32
    return %arg0, %arg1 : i32, i32
  }
  func.func @transform_2(%arg0: i32, %arg1: i32) -> (i32, i32) {
    %c0_i32 = arith.constant 0 : i32
    return %arg0, %arg1 : i32, i32
  }
  func.func @transform_3(%arg0: i32, %arg1: i32) -> (i32, i32) {
    %c0_i32 = arith.constant 0 : i32
    return %arg0, %arg1 : i32, i32
  }
}

</mosaic_0001>

<llo_original>
// kernel: tpu_custom_call.1
$region0: #{tpu_custom_call.1}
  #allocation0 [shape = 'u32[]', space=smem, size = 0x4, offset = 0x4, fixed_abs, tag = 'smem constant byte address 0x4 - core index']
  #allocation1 [shape = 'u32[72,128]{1,0:T(1,128)}', space=vmem, size = 0x9000, scoped, tag = 'internal scratch']
  %s0 = inlined_call_operand.hbm [shape: f32[2,16], index: 0, kind: input, shape index: {}]
  %s1 = inlined_call_operand.hbm [shape: f32[2,16], index: 1, kind: input, shape index: {}]
  %s2 = inlined_call_operand.hbm [shape: f32[2,16], index: 2, kind: input, shape index: {}]
  %s3 = inlined_call_operand.hbm [shape: f32[1,1], index: 3, kind: output, shape index: {}]
  %s4 = sld [smem:[#allocation0]]
  $region34: #{tpu_custom_call.1} parent=0
    _
  %s6 = ssub.s32 1, %s4
  %s7 = scalar_select 0, %s6, %s4
  $region1: #{tpu_custom_call.1} parent=0
    #allocation2 [shape = 'u8[1024]{0}', space=vmem, size = 0x400, scoped, tag = 'input window, operand 0, single buffered']
    #allocation3 [shape = 's32[1]{0}', space=sflag, size = 0x4, scoped, tag = 'scoped memory for tpu_custom_call.1']
    #allocation4 [shape = 's32[1]{0}', space=sflag, size = 0x4, scoped, tag = 'scoped memory for tpu_custom_call.1']
    #allocation5 [shape = 'u8[1024]{0}', space=vmem, size = 0x400, scoped, tag = 'input window, operand 1, single buffered']
    #allocation6 [shape = 's32[1]{0}', space=sflag, size = 0x4, scoped, tag = 'scoped memory for tpu_custom_call.1']
    #allocation7 [shape = 'u8[1024]{0}', space=vmem, size = 0x400, scoped, tag = 'input window, operand 2, single buffered']
    #allocation8 [shape = 'u8[512]{0}', space=smem, size = 0x200, scoped, tag = 'output window, operand 0, single buffered']
    %8 = vsyncpa [#allocation3], 0
    %9 = vsyncpa [#allocation6], 0
    %10 = vsyncpa [#allocation4], 0
    // Predicated region
    $region2: #{tpu_custom_call.1} parent=1 // pred_check
      _
    $region3: #{tpu_custom_call.1} parent=1 // pred_check_branch
      %12 = sbr.rel (0) target = $region5
    $region4: #{tpu_custom_call.1} parent=1 // pred_region
      %14 = vsyncadd [#allocation3], 0
      %s16 = sshll.u32 %s0, 4
      %s17 = int_to_ptr.hbm [resolvable:$true] %s16
      %s18 = sshll.u32 [#allocation2], 4
      %s19 = int_to_ptr.vmem [resolvable:$true] %s18
      %21 = dma.hbm_to_vmem [thread:$0]  %s17, 32, %s19, [#allocation3]
    $region5: #{tpu_custom_call.1} parent=1 // pred_fallthru
      _
    // Predicated region
    $region6: #{tpu_custom_call.1} parent=1 // pred_check
      _
    $region7: #{tpu_custom_call.1} parent=1 // pred_check_branch
      %23 = sbr.rel (0) target = $region9
    $region8: #{tpu_custom_call.1} parent=1 // pred_region
      %25 = vsyncadd [#allocation6], 0
      %s27 = sshll.u32 %s1, 4
      %s28 = int_to_ptr.hbm [resolvable:$true] %s27
      %s29 = sshll.u32 [#allocation5], 4
      %s30 = int_to_ptr.vmem [resolvable:$true] %s29
      %32 = dma.hbm_to_vmem [thread:$0]  %s28, 32, %s30, [#allocation6]
    $region9: #{tpu_custom_call.1} parent=1 // pred_fallthru
      _
    // Predicated region
    $region10: #{tpu_custom_call.1} parent=1 // pred_check
      _
    $region11: #{tpu_custom_call.1} parent=1 // pred_check_branch
      %34 = sbr.rel (0) target = $region13
    $region12: #{tpu_custom_call.1} parent=1 // pred_region
      %36 = vsyncadd [#allocation6], 0
      %s38 = sshll.u32 %s2, 4
      %s39 = int_to_ptr.hbm [resolvable:$true] %s38
      %s40 = sshll.u32 [#allocation7], 4
      %s41 = int_to_ptr.vmem [resolvable:$true] %s40
      %43 = dma.hbm_to_vmem [thread:$0]  %s39, 32, %s41, [#allocation6]
    $region13: #{tpu_custom_call.1} parent=1 // pred_fallthru
      _
    // Predicated region
    $region14: #{tpu_custom_call.1} parent=1 // pred_check
      _
    $region15: #{tpu_custom_call.1} parent=1 // pred_check_branch
      %45 = sbr.rel (0) target = $region17
    $region16: #{tpu_custom_call.1} parent=1 // pred_region
      %47 = dma.done [#allocation3], 32
    $region17: #{tpu_custom_call.1} parent=1 // pred_fallthru
      _
    // Predicated region
    $region18: #{tpu_custom_call.1} parent=1 // pred_check
      _
    $region19: #{tpu_custom_call.1} parent=1 // pred_check_branch
      %49 = sbr.rel (0) target = $region21
    $region20: #{tpu_custom_call.1} parent=1 // pred_region
      %51 = dma.done [#allocation6], 32
    $region21: #{tpu_custom_call.1} parent=1 // pred_fallthru
      _
    // Predicated region
    $region22: #{tpu_custom_call.1} parent=1 // pred_check
      _
    $region23: #{tpu_custom_call.1} parent=1 // pred_check_branch
      %53 = sbr.rel (0) target = $region25
    $region24: #{tpu_custom_call.1} parent=1 // pred_region
      %55 = dma.done [#allocation6], 32
    $region25: #{tpu_custom_call.1} parent=1 // pred_fallthru
      _
    %v56 = vld [vmem:[#allocation2] sm:$0x3]
    %v57 = vld [vmem:[#allocation5] sm:$0x3]
    %v58 = vld [vmem:[#allocation7] sm:$0x3]
    %v59 = vrcp.pop %v57
    %v60 = vmul.f32 %v57, %v59
    %v61 = vsub.f32 1.0, %v60
    %v62 = vmul.f32 %v59, %v61
    %v63 = vadd.f32 %v59, %v62
    %vm64 = vweird.f32 %v57
    %vm65 = vweird.f32 %v59
    %vm66 = vmor %vm64, %vm65
    %v67 = vsel %vm66, %v59, %v63
    %v68 = vand.u32 2147483647, %v57
    %vm69 = vcmp.eq.f32.partialorder %v68, 8.507059e+37
    %v70 = vand.u32 %v57, 2147483648
    %v71 = vor.u32 1.1754944e-38, %v70
    %v72 = vsel %vm69, %v71, %v67
    %v73 = vmul.f32 %v58, %v72
    %vm74 = vcmp.ne.f32.partialorder %v73, %v73
    %v75 = vsel %vm74, 0.0, %v73
    %vm76 = vcmp.eq.f32.partialorder %v75, inf
    %v77 = vsel %vm76, 0.0, %v75
    %v78 = vsub.f32 %v56, %v57
    %v79 = vmul.f32 %v78, %v77
    %v80 = vand.u32 2147483647, %v79
    %vm81 = vcmask 123904
    %v82 = vsel %vm81, %v80, 0.0
    %83 = vadd.xlane.f32.xlu0 %v82
    %v84 = vpop.xlane.xlu0 %83
    %v85 = vrot.slane %v84, 4
    %v86 = vadd.f32 %v84, %v85
    %v87 = vrot.slane %v86, 2
    %v88 = vadd.f32 %v86, %v87
    %v89 = vrot.slane %v88, 1
    %v90 = vadd.f32 %v88, %v89
    %s91 = vtos %v90
    %s92 = scalar_lea.smem [#allocation8], 0
    %93 = sst [smem:[%s92]] %s91
    // Predicated region
    $region26: #{tpu_custom_call.1} parent=1 // pred_check
      _
    $region27: #{tpu_custom_call.1} parent=1 // pred_check_branch
      %95 = sbr.rel (0) target = $region29
    $region28: #{tpu_custom_call.1} parent=1 // pred_region
      %97 = vsyncadd [#allocation4], 0
      %s99 = sshll.u32 %s3, 4
      %s100 = int_to_ptr.hbm [resolvable:$true] %s99
      %102 = dma.smem_to_hbm [#allocation8], 16, %s100, [#allocation4]
    $region29: #{tpu_custom_call.1} parent=1 // pred_fallthru
      _
    // Predicated region
    $region30: #{tpu_custom_call.1} parent=1 // pred_check
      _
    $region31: #{tpu_custom_call.1} parent=1 // pred_check_branch
      %104 = sbr.rel (0) target = $region33
    $region32: #{tpu_custom_call.1} parent=1 // pred_region
      %106 = dma.done [#allocation4], 16
    $region33: #{tpu_custom_call.1} parent=1 // pred_fallthru
      _
    %107 = sfence
    %108 = vsyncpa [#allocation3], 1
    %109 = vsyncpa [#allocation6], 1
    %110 = vsyncpa [#allocation4], 1

</llo_original>
